<compile_context>
chip_gen: v5e
topology: v5e:2x2
jax: 0.10.0
libtpu: 0.0.40
codegen_flags: <defaults>
</compile_context>

<pallas_src>
import functools
import math

import jax
import jax.numpy as jnp
from jax import lax
from jax.experimental import pallas as pl
from jax.experimental.pallas import tpu as pltpu

MEAN = 0.0
STD = 0.01

# 32-bit hashes per element; each hash yields two 16-bit uniforms.
# 2 hashes -> sum of 4 uniforms (support +-3.46 sigma), keeps the kernel near
# the HBM roofline.  Increase for heavier Gaussian tails if ever required.
_NUM_HASHES = 2


def _i32(v):
    """Python uint32 literal -> equivalent int32 (two's-complement) value."""
    return v - (1 << 32) if v >= (1 << 31) else v


_K1 = _i32(0x7FEB352D)
_K2 = _i32(0x846CA68B)
_GOLD = _i32(0x9E3779B9)
_STREAM = _i32(0x85EBCA6B)


def _mix(v):
    # murmur3 fmix32.  jnp's >> on int32 is an *arithmetic* shift, so mask the
    # shifted value to recover exact logical-shift semantics (keeps the output
    # bits unbiased); int32 multiplies wrap, which is what we want.
    v = v ^ ((v >> 16) & 0xFFFF)
    v = v * _K1
    v = v ^ ((v >> 15) & 0x1FFFF)
    v = v * _K2
    v = v ^ ((v >> 16) & 0xFFFF)
    return v


def _noise_kernel(seed_ref, x_ref, o_ref, *, block_rows, scale, shift):
    rows, cols = x_ref.shape
    i = pl.program_id(0)

    # Per-element global counter (independent of the tiling / grid split).
    r = lax.broadcasted_iota(jnp.int32, (rows, cols), 0)
    c = lax.broadcasted_iota(jnp.int32, (rows, cols), 1)
    ctr = (r + i * block_rows) * cols + c

    # Hash the seed once (scalar work) and fold it into every counter so that
    # different seeds give unrelated noise fields, not merely shifted ones.
    hseed = _mix(seed_ref[0] + _GOLD)
    base = ctr ^ hseed

    # Sum of 2 * _NUM_HASHES 16-bit uniforms ~ Gaussian (CLT); the affine map
    # to (mean, std) is folded into the static `scale` / `shift` constants.
    acc = None
    for k in range(_NUM_HASHES):
        h = _mix(base + k * _STREAM)
        pieces = ((h >> 16) & 0xFFFF) + (h & 0xFFFF)
        acc = pieces if acc is None else acc + pieces

    noise = acc.astype(jnp.float32) * jnp.float32(scale) + jnp.float32(shift)
    o_ref[...] = x_ref[...] + noise.astype(o_ref.dtype)


def noise_layer(x, seed, *, mean=MEAN, std=STD, training=True, block_rows=1024):
    """Pallas implementation of NoiseLayer.forward."""
    if not training:
        # eval mode: identity, matching the PyTorch module
        return x

    orig_shape = x.shape
    orig_dtype = x.dtype

    flat = x.reshape(-1)
    n = flat.shape[0]

    # Pad only to a lane multiple (128); the tiled grid tolerates a ragged
    # final row-block, so no 8*128 padding / extra HBM copies are needed.
    pad = (-n) % 128
    if pad:
        flat = jnp.pad(flat, (0, pad))
    rows = flat.shape[0] // 128
    x2d = flat.reshape(rows, 128)

    # Row tile: 512 KiB f32 per buffer at 1024 rows -> pipelined and far under
    # v7x's ~32 MiB scoped VMEM.  Small inputs use one full-array block.
    tr = min(block_rows, rows)
    grid = (pl.cdiv(rows, tr),)

    # Fold Irwin-Hall -> N(0,1) normalisation and (mean, std) into constants:
    # noise = acc * scale + shift.
    n_uniform = 2 * _NUM_HASHES
    gauss_scale = math.sqrt(12.0 / n_uniform) / 65536.0
    scale = std * gauss_scale
    shift = mean - std * gauss_scale * 32767.5 * n_uniform

    seed_arr = jnp.asarray([seed], dtype=jnp.int32)
    kernel = functools.partial(
        _noise_kernel, block_rows=tr, scale=float(scale), shift=float(shift))

    out2d = pl.pallas_call(
        kernel,
        out_shape=jax.ShapeDtypeStruct((rows, 128), orig_dtype),
        grid_spec=pltpu.PrefetchScalarGridSpec(
            num_scalar_prefetch=1,
            grid=grid,
            in_specs=[pl.BlockSpec((tr, 128), lambda i, seed: (i, 0))],
            out_specs=pl.BlockSpec((tr, 128), lambda i, seed: (i, 0)),
        ),
        compiler_params=pltpu.CompilerParams(
            dimension_semantics=("parallel",),
        ),
    )(seed_arr, x2d)

    out_flat = out2d.reshape(-1)
    if pad:
        out_flat = out_flat[:n]
    return out_flat.reshape(orig_shape)


if __name__ == "__main__":
    key = jax.random.PRNGKey(0)
    # NCHW input consistent with a conv-style pipeline: batch=2, C=4, H=W=16
    x = jax.random.normal(key, (2, 4, 16, 16), dtype=jnp.float32)

    # training mode: noise added inside the Pallas kernel
    y_train = jax.block_until_ready(noise_layer(x, seed=1234, training=True))
    # eval mode: identity
    y_eval = jax.block_until_ready(noise_layer(x, seed=1234, training=False))

    assert y_train.shape == x.shape and y_train.dtype == x.dtype
    assert jnp.allclose(y_eval, x)

    noise = y_train - x
    max_abs = float(jnp.max(jnp.abs(noise)))
    assert 0.0 < max_abs < 0.1                       # std=0.01 noise, bounded
    assert abs(float(jnp.mean(noise))) < 2e-3        # ~zero-mean
    assert 0.005 < float(jnp.std(noise)) < 0.02      # ~std=0.01

    # different seed -> different noise field
    y_train2 = jax.block_until_ready(noise_layer(x, seed=4321, training=True))
    assert not jnp.allclose(y_train, y_train2)

    print("KERNEL_OK")
</pallas_src>

<mosaic_0001>
module attributes {stable_mosaic.version = 11 : i64} {
  func.func @_noise_kernel(%arg0: i32, %arg1: memref<1xi32, #tpu.memory_space<smem>>, %arg2: memref<16x128xf32, #tpu.memory_space<vmem>>, %arg3: memref<16x128xf32, #tpu.memory_space<vmem>>) attributes {dimension_semantics = [#tpu.dimension_semantics<parallel>], iteration_bounds = array<i64: 1>, scalar_prefetch = 1 : i64, scratch_operands = 0 : i64, tpu.core_type = #tpu.core_type<tc>, window_params = [{transform_indices = @transform_0, window_bounds = array<i64: 16, 128>}, {transform_indices = @transform_1, window_bounds = array<i64: 16, 128>}]} {
    %0 = tpu.iota {dimensions = array<i32: 0>} : vector<16x128xi32>
    %1 = tpu.iota {dimensions = array<i32: 1>} : vector<16x128xi32>
    %c16_i32 = arith.constant 16 : i32
    %2 = arith.muli %arg0, %c16_i32 : i32
    %3 = vector.broadcast %2 : i32 to vector<16x128xi32>
    %4 = arith.addi %0, %3 : vector<16x128xi32>
    %c128_i32 = arith.constant 128 : i32
    %5 = vector.broadcast %c128_i32 : i32 to vector<16x128xi32>
    %6 = arith.muli %4, %5 : vector<16x128xi32>
    %7 = arith.addi %6, %1 : vector<16x128xi32>
    %c0 = arith.constant 0 : index
    %8 = memref.load %arg1[%c0] : memref<1xi32, #tpu.memory_space<smem>>
    %c-1640531527_i32 = arith.constant -1640531527 : i32
    %9 = arith.addi %8, %c-1640531527_i32 : i32
    %c16_i32_0 = arith.constant 16 : i32
    %10 = arith.shrsi %9, %c16_i32_0 : i32
    %c65535_i32 = arith.constant 65535 : i32
    %11 = arith.andi %10, %c65535_i32 : i32
    %12 = arith.xori %9, %11 : i32
    %c2146121005_i32 = arith.constant 2146121005 : i32
    %13 = arith.muli %12, %c2146121005_i32 : i32
    %c15_i32 = arith.constant 15 : i32
    %14 = arith.shrsi %13, %c15_i32 : i32
    %c131071_i32 = arith.constant 131071 : i32
    %15 = arith.andi %14, %c131071_i32 : i32
    %16 = arith.xori %13, %15 : i32
    %c-2073254261_i32 = arith.constant -2073254261 : i32
    %17 = arith.muli %16, %c-2073254261_i32 : i32
    %c16_i32_1 = arith.constant 16 : i32
    %18 = arith.shrsi %17, %c16_i32_1 : i32
    %c65535_i32_2 = arith.constant 65535 : i32
    %19 = arith.andi %18, %c65535_i32_2 : i32
    %20 = arith.xori %17, %19 : i32
    %21 = vector.broadcast %20 : i32 to vector<16x128xi32>
    %22 = arith.xori %7, %21 : vector<16x128xi32>
    %c0_i32 = arith.constant 0 : i32
    %23 = vector.broadcast %c0_i32 : i32 to vector<16x128xi32>
    %24 = arith.addi %22, %23 : vector<16x128xi32>
    %c16_i32_3 = arith.constant 16 : i32
    %25 = vector.broadcast %c16_i32_3 : i32 to vector<16x128xi32>
    %26 = arith.shrsi %24, %25 : vector<16x128xi32>
    %c65535_i32_4 = arith.constant 65535 : i32
    %27 = vector.broadcast %c65535_i32_4 : i32 to vector<16x128xi32>
    %28 = arith.andi %26, %27 : vector<16x128xi32>
    %29 = arith.xori %24, %28 : vector<16x128xi32>
    %c2146121005_i32_5 = arith.constant 2146121005 : i32
    %30 = vector.broadcast %c2146121005_i32_5 : i32 to vector<16x128xi32>
    %31 = arith.muli %29, %30 : vector<16x128xi32>
    %c15_i32_6 = arith.constant 15 : i32
    %32 = vector.broadcast %c15_i32_6 : i32 to vector<16x128xi32>
    %33 = arith.shrsi %31, %32 : vector<16x128xi32>
    %c131071_i32_7 = arith.constant 131071 : i32
    %34 = vector.broadcast %c131071_i32_7 : i32 to vector<16x128xi32>
    %35 = arith.andi %33, %34 : vector<16x128xi32>
    %36 = arith.xori %31, %35 : vector<16x128xi32>
    %c-2073254261_i32_8 = arith.constant -2073254261 : i32
    %37 = vector.broadcast %c-2073254261_i32_8 : i32 to vector<16x128xi32>
    %38 = arith.muli %36, %37 : vector<16x128xi32>
    %c16_i32_9 = arith.constant 16 : i32
    %39 = vector.broadcast %c16_i32_9 : i32 to vector<16x128xi32>
    %40 = arith.shrsi %38, %39 : vector<16x128xi32>
    %c65535_i32_10 = arith.constant 65535 : i32
    %41 = vector.broadcast %c65535_i32_10 : i32 to vector<16x128xi32>
    %42 = arith.andi %40, %41 : vector<16x128xi32>
    %43 = arith.xori %38, %42 : vector<16x128xi32>
    %c16_i32_11 = arith.constant 16 : i32
    %44 = vector.broadcast %c16_i32_11 : i32 to vector<16x128xi32>
    %45 = arith.shrsi %43, %44 : vector<16x128xi32>
    %c65535_i32_12 = arith.constant 65535 : i32
    %46 = vector.broadcast %c65535_i32_12 : i32 to vector<16x128xi32>
    %47 = arith.andi %45, %46 : vector<16x128xi32>
    %c65535_i32_13 = arith.constant 65535 : i32
    %48 = vector.broadcast %c65535_i32_13 : i32 to vector<16x128xi32>
    %49 = arith.andi %43, %48 : vector<16x128xi32>
    %50 = arith.addi %47, %49 : vector<16x128xi32>
    %c-2048144789_i32 = arith.constant -2048144789 : i32
    %51 = vector.broadcast %c-2048144789_i32 : i32 to vector<16x128xi32>
    %52 = arith.addi %22, %51 : vector<16x128xi32>
    %c16_i32_14 = arith.constant 16 : i32
    %53 = vector.broadcast %c16_i32_14 : i32 to vector<16x128xi32>
    %54 = arith.shrsi %52, %53 : vector<16x128xi32>
    %c65535_i32_15 = arith.constant 65535 : i32
    %55 = vector.broadcast %c65535_i32_15 : i32 to vector<16x128xi32>
    %56 = arith.andi %54, %55 : vector<16x128xi32>
    %57 = arith.xori %52, %56 : vector<16x128xi32>
    %c2146121005_i32_16 = arith.constant 2146121005 : i32
    %58 = vector.broadcast %c2146121005_i32_16 : i32 to vector<16x128xi32>
    %59 = arith.muli %57, %58 : vector<16x128xi32>
    %c15_i32_17 = arith.constant 15 : i32
    %60 = vector.broadcast %c15_i32_17 : i32 to vector<16x128xi32>
    %61 = arith.shrsi %59, %60 : vector<16x128xi32>
    %c131071_i32_18 = arith.constant 131071 : i32
    %62 = vector.broadcast %c131071_i32_18 : i32 to vector<16x128xi32>
    %63 = arith.andi %61, %62 : vector<16x128xi32>
    %64 = arith.xori %59, %63 : vector<16x128xi32>
    %c-2073254261_i32_19 = arith.constant -2073254261 : i32
    %65 = vector.broadcast %c-2073254261_i32_19 : i32 to vector<16x128xi32>
    %66 = arith.muli %64, %65 : vector<16x128xi32>
    %c16_i32_20 = arith.constant 16 : i32
    %67 = vector.broadcast %c16_i32_20 : i32 to vector<16x128xi32>
    %68 = arith.shrsi %66, %67 : vector<16x128xi32>
    %c65535_i32_21 = arith.constant 65535 : i32
    %69 = vector.broadcast %c65535_i32_21 : i32 to vector<16x128xi32>
    %70 = arith.andi %68, %69 : vector<16x128xi32>
    %71 = arith.xori %66, %70 : vector<16x128xi32>
    %c16_i32_22 = arith.constant 16 : i32
    %72 = vector.broadcast %c16_i32_22 : i32 to vector<16x128xi32>
    %73 = arith.shrsi %71, %72 : vector<16x128xi32>
    %c65535_i32_23 = arith.constant 65535 : i32
    %74 = vector.broadcast %c65535_i32_23 : i32 to vector<16x128xi32>
    %75 = arith.andi %73, %74 : vector<16x128xi32>
    %c65535_i32_24 = arith.constant 65535 : i32
    %76 = vector.broadcast %c65535_i32_24 : i32 to vector<16x128xi32>
    %77 = arith.andi %71, %76 : vector<16x128xi32>
    %78 = arith.addi %75, %77 : vector<16x128xi32>
    %79 = arith.addi %50, %78 : vector<16x128xi32>
    %80 = arith.sitofp %79 : vector<16x128xi32> to vector<16x128xf32>
    %cst = arith.constant 2.6428998E-7 : f32
    %81 = vector.broadcast %cst : f32 to vector<16x128xf32>
    %82 = arith.mulf %80, %81 : vector<16x128xf32>
    %cst_25 = arith.constant -0.0346404873 : f32
    %83 = vector.broadcast %cst_25 : f32 to vector<16x128xf32>
    %84 = arith.addf %82, %83 : vector<16x128xf32>
    %c0_26 = arith.constant 0 : index
    %c0_27 = arith.constant 0 : index
    %85 = vector.load %arg2[%c0_26, %c0_27] : memref<16x128xf32, #tpu.memory_space<vmem>>, vector<16x128xf32>
    %86 = arith.addf %85, %84 : vector<16x128xf32>
    %c0_28 = arith.constant 0 : index
    %c0_29 = arith.constant 0 : index
    %87 = vector.load %arg3[%c0_28, %c0_29] : memref<16x128xf32, #tpu.memory_space<vmem>>, vector<16x128xf32>
    tpu.vector_store %arg3[%c0_28, %c0_29], %86 {strides = array<i32>} : memref<16x128xf32, #tpu.memory_space<vmem>>, vector<16x128xf32>,
    return
  }
  func.func @transform_0(%arg0: i32, %arg1: memref<1xi32, #tpu.memory_space<smem>>) -> (i32, i32) {
    %c0_i32 = arith.constant 0 : i32
    %c0_i32_0 = arith.constant 0 : i32
    return %arg0, %c0_i32 : i32, i32
  }
  func.func @transform_1(%arg0: i32, %arg1: memref<1xi32, #tpu.memory_space<smem>>) -> (i32, i32) {
    %c0_i32 = arith.constant 0 : i32
    %c0_i32_0 = arith.constant 0 : i32
    return %arg0, %c0_i32 : i32, i32
  }
}

</mosaic_0001>

<llo_original>
// kernel: tpu_custom_call.1
$region0: #{tpu_custom_call.1}
  #allocation0 [shape = 'u32[]', space=smem, size = 0x4, offset = 0x4, fixed_abs, tag = 'smem constant byte address 0x4 - core index']
  #allocation1 [shape = 'u32[72,128]{1,0:T(1,128)}', space=vmem, size = 0x9000, scoped, tag = 'internal scratch']
  #allocation2 [shape = 's32[1]{0}', space=sflag, size = 0x4, scoped, tag = 'scoped memory for tpu_custom_call.1']
  #allocation3 [shape = 's32[1]{0:T(128)S(6)}', space=smem, size = 0x200, scoped, tag = 'prefetched SMEM operand 0']
  %s0 = inlined_call_operand.<no memory space> [shape: s32[1], index: 0, kind: input, shape index: {}]
  %s1 = inlined_call_operand.hbm [shape: f32[16,128], index: 1, kind: input, shape index: {}]
  %s2 = inlined_call_operand.hbm [shape: f32[16,128], index: 2, kind: output, shape index: {}]
  %s3 = sld [smem:[#allocation0]]
  $region18: #{tpu_custom_call.1} parent=0
    _
  %s5 = ssub.s32 1, %s3
  %s6 = scalar_select 0, %s5, %s3
  %7 = sst [smem:[#allocation3]] %s0
  $region1: #{tpu_custom_call.1} parent=0
    #allocation4 [shape = 'u8[8192]{0}', space=vmem, size = 0x2000, scoped, tag = 'input window, operand 1, single buffered']
    #allocation5 [shape = 's32[1]{0}', space=sflag, size = 0x4, scoped, tag = 'scoped memory for tpu_custom_call.1']
    #allocation6 [shape = 's32[1]{0}', space=sflag, size = 0x4, scoped, tag = 'scoped memory for tpu_custom_call.1']
    #allocation7 [shape = 'u8[8192]{0}', space=vmem, size = 0x2000, scoped, tag = 'output window, operand 0, single buffered']
    %8 = vsyncpa [#allocation5], 0
    %9 = vsyncpa [#allocation6], 0
    // Predicated region
    $region2: #{tpu_custom_call.1} parent=1 // pred_check
      _
    $region3: #{tpu_custom_call.1} parent=1 // pred_check_branch
      %11 = sbr.rel (0) target = $region5
    $region4: #{tpu_custom_call.1} parent=1 // pred_region
      %13 = vsyncadd [#allocation5], 0
      %s14 = sshll.u32 %s1, 4
      %s15 = int_to_ptr.hbm [resolvable:$true] %s14
      %s16 = sshll.u32 [#allocation4], 4
      %s17 = int_to_ptr.vmem [resolvable:$true] %s16
      %22 = dma.hbm_to_vmem [thread:$0]  %s15, 256, %s17, [#allocation5], 128, 128, 8
    $region5: #{tpu_custom_call.1} parent=1 // pred_fallthru
      _
    // Predicated region
    $region6: #{tpu_custom_call.1} parent=1 // pred_check
      _
    $region7: #{tpu_custom_call.1} parent=1 // pred_check_branch
      %24 = sbr.rel (0) target = $region9
    $region8: #{tpu_custom_call.1} parent=1 // pred_region
      %26 = dma.done [#allocation5], 256
    $region9: #{tpu_custom_call.1} parent=1 // pred_fallthru
      _
    %v27 = vlaneseq
    %v28 = vshrl.u32 %v27, 7
    %v29 = vadd.s32 %v28, 8
    %v30 = vlaneseq
    %v31 = vand.u32 %v30, 127
    %s32 = smul.u32 0, 16
    %v33 = vstv %s32
    %v34 = vadd.s32 %v28, %v33
    %v35 = vadd.s32 %v29, %v33
    %v36 = vmul.u32 %v34, 128
    %v37 = vmul.u32 %v35, 128
    %v38 = vadd.s32 %v36, %v31
    %v39 = vadd.s32 %v37, %v31
    %s40 = sld [smem:[#allocation3]]
    %s41 = sadd.s32 %s40, 2654435769
    %s42 = sshra.s32 %s41, 16
    %s43 = sand.u32 %s42, 65535
    %s44 = sxor.u32 %s41, %s43
    %s45 = smul.u32 %s44, 2146121005
    %s46 = sshra.s32 %s45, 15
    %s47 = sand.u32 %s46, 131071
    %s48 = sxor.u32 %s45, %s47
    %s49 = smul.u32 %s48, 2221713035
    %s50 = sshra.s32 %s49, 16
    %s51 = sand.u32 %s50, 65535
    %s52 = sxor.u32 %s49, %s51
    %v53 = vstv %s52
    %v54 = vxor.u32 %v38, %v53
    %v55 = vxor.u32 %v39, %v53
    %v56 = vshra.s32 %v54, 16
    %v57 = vshra.s32 %v55, 16
    %v58 = vand.u32 %v56, 65535
    %v59 = vand.u32 %v57, 65535
    %v60 = vxor.u32 %v54, %v58
    %v61 = vxor.u32 %v55, %v59
    %v62 = vmul.u32 %v60, 2146121005
    %v63 = vmul.u32 %v61, 2146121005
    %v64 = vshra.s32 %v62, 15
    %v65 = vshra.s32 %v63, 15
    %v66 = vand.u32 %v64, 131071
    %v67 = vand.u32 %v65, 131071
    %v68 = vxor.u32 %v62, %v66
    %v69 = vxor.u32 %v63, %v67
    %v70 = vmul.u32 %v68, 2221713035
    %v71 = vmul.u32 %v69, 2221713035
    %v72 = vshra.s32 %v70, 16
    %v73 = vshra.s32 %v71, 16
    %v74 = vand.u32 %v72, 65535
    %v75 = vand.u32 %v73, 65535
    %v76 = vxor.u32 %v70, %v74
    %v77 = vxor.u32 %v71, %v75
    %v78 = vshra.s32 %v76, 16
    %v79 = vshra.s32 %v77, 16
    %v80 = vand.u32 %v78, 65535
    %v81 = vand.u32 %v79, 65535
    %v82 = vand.u32 %v76, 65535
    %v83 = vand.u32 %v77, 65535
    %v84 = vadd.s32 %v80, %v82
    %v85 = vadd.s32 %v81, %v83
    %v86 = vadd.s32 %v54, 2246822507
    %v87 = vadd.s32 %v55, 2246822507
    %v88 = vshra.s32 %v86, 16
    %v89 = vshra.s32 %v87, 16
    %v90 = vand.u32 %v88, 65535
    %v91 = vand.u32 %v89, 65535
    %v92 = vxor.u32 %v86, %v90
    %v93 = vxor.u32 %v87, %v91
    %v94 = vmul.u32 %v92, 2146121005
    %v95 = vmul.u32 %v93, 2146121005
    %v96 = vshra.s32 %v94, 15
    %v97 = vshra.s32 %v95, 15
    %v98 = vand.u32 %v96, 131071
    %v99 = vand.u32 %v97, 131071
    %v100 = vxor.u32 %v94, %v98
    %v101 = vxor.u32 %v95, %v99
    %v102 = vmul.u32 %v100, 2221713035
    %v103 = vmul.u32 %v101, 2221713035
    %v104 = vshra.s32 %v102, 16
    %v105 = vshra.s32 %v103, 16
    %v106 = vand.u32 %v104, 65535
    %v107 = vand.u32 %v105, 65535
    %v108 = vxor.u32 %v102, %v106
    %v109 = vxor.u32 %v103, %v107
    %v110 = vshra.s32 %v108, 16
    %v111 = vshra.s32 %v109, 16
    %v112 = vand.u32 %v110, 65535
    %v113 = vand.u32 %v111, 65535
    %v114 = vand.u32 %v108, 65535
    %v115 = vand.u32 %v109, 65535
    %v116 = vadd.s32 %v112, %v114
    %v117 = vadd.s32 %v113, %v115
    %v118 = vadd.s32 %v84, %v116
    %v119 = vadd.s32 %v85, %v117
    %v120 = vcvt.s32.f32 %v118
    %v121 = vcvt.s32.f32 %v119
    %v122 = vmul.f32 %v120, 2.6428998e-07
    %v123 = vmul.f32 %v121, 2.6428998e-07
    %v124 = vadd.f32 %v122, -0.034640487
    %v125 = vadd.f32 %v123, -0.034640487
    %v126 = vld [vmem:[#allocation4] sm:$0xff]
    %v127 = vld [vmem:[#allocation4 + $0x8] sm:$0xff]
    %v128 = vadd.f32 %v126, %v124
    %v129 = vadd.f32 %v127, %v125
    %130 = vst [vmem:[#allocation7] sm:$0xff] %v128
    %131 = vst [vmem:[#allocation7 + $0x8] sm:$0xff] %v129
    // Predicated region
    $region10: #{tpu_custom_call.1} parent=1 // pred_check
      _
    $region11: #{tpu_custom_call.1} parent=1 // pred_check_branch
      %133 = sbr.rel (0) target = $region13
    $region12: #{tpu_custom_call.1} parent=1 // pred_region
      %135 = vsyncadd [#allocation6], 0
      %s136 = sshll.u32 [#allocation7], 4
      %s137 = int_to_ptr.vmem [resolvable:$true] %s136
      %s138 = sshll.u32 %s2, 4
      %s139 = int_to_ptr.hbm [resolvable:$true] %s138
      %144 = dma.vmem_to_hbm [thread:$0]  %s137, 256, %s139, [#allocation6], 128, 128, 8
    $region13: #{tpu_custom_call.1} parent=1 // pred_fallthru
      _
    // Predicated region
    $region14: #{tpu_custom_call.1} parent=1 // pred_check
      _
    $region15: #{tpu_custom_call.1} parent=1 // pred_check_branch
      %146 = sbr.rel (0) target = $region17
    $region16: #{tpu_custom_call.1} parent=1 // pred_region
      %148 = dma.done [#allocation6], 256
    $region17: #{tpu_custom_call.1} parent=1 // pred_fallthru
      _
    %149 = vsyncpa [#allocation5], 1
    %150 = vsyncpa [#allocation6], 1

</llo_original>
